<compile_context>
chip_gen: v5e
topology: v5e:2x2
jax: 0.10.0
libtpu: 0.0.40
codegen_flags: <defaults>
</compile_context>

<pallas_src>
import jax
import jax.numpy as jnp
from jax import lax
from jax.experimental import pallas as pl
from jax.experimental.pallas import tpu as pltpu

DROPOUT_P = 0.1
KEEP_SCALE = 1.0 / (1.0 - DROPOUT_P)
# keep iff hash >= threshold  ->  P(keep) = 1 - p  (to within 2^-32)
DROP_THRESHOLD_U32 = int(DROPOUT_P * (1 << 32))

# Contract last dim of x with last dim of a torch-layout (out, in) weight.
_NT_DIMS = (((1,), (1,)), ((), ()))


def mlp_dropout_kernel(seed_ref, x_ref, w1_ref, b1_ref, w2_ref, b2_ref, o_ref):
    # ---- fc1 + ReLU (MXU matmul, f32 accumulation; weight consumed NT) ----
    x = x_ref[...]
    h = lax.dot_general(x, w1_ref[...], _NT_DIMS, preferred_element_type=jnp.float32)
    h = jnp.maximum(h + b1_ref[...], 0.0)

    # ---- fc2 ----
    y = lax.dot_general(h, w2_ref[...], _NT_DIMS, preferred_element_type=jnp.float32)
    y = y + b2_ref[...]

    # ---- Dropout (training semantics: keep w.p. 1-p, scale kept by 1/(1-p)) ----
    # Counter-based hash PRNG: per-element counter XOR seed, murmur3 finalizer,
    # then ONE uint32 compare per element.  Plain jnp integer ops -> lowers on
    # both Mosaic TPU and interpret/CPU.
    n, m = y.shape
    rows = lax.broadcasted_iota(jnp.int32, (n, m), 0)
    cols = lax.broadcasted_iota(jnp.int32, (n, m), 1)
    ctr = (rows * m + cols).astype(jnp.uint32)

    seed_u = seed_ref[0].astype(jnp.uint32)
    h32 = ctr ^ (seed_u * jnp.uint32(0x9E3779B9))
    h32 = h32 ^ (h32 >> 16)
    h32 = h32 * jnp.uint32(0x7FEB352D)
    h32 = h32 ^ (h32 >> 15)
    h32 = h32 * jnp.uint32(0x846CA68B)
    h32 = h32 ^ (h32 >> 16)

    keep = h32 >= jnp.uint32(DROP_THRESHOLD_U32)
    o_ref[...] = jnp.where(keep, y * jnp.float32(KEEP_SCALE), 0.0).astype(o_ref.dtype)


@jax.jit
def linear_mlp_forward(x, w1, b1, w2, b2, seed):
    """Forward of Linear(input_dim, hidden_dim, output_dim, dropout=0.1), training mode.

    x:  (N, input_dim) f32
    w1: (hidden_dim, input_dim)  b1: (hidden_dim,)    -- torch nn.Linear layout
    w2: (output_dim, hidden_dim) b2: (output_dim,)    -- torch nn.Linear layout
    seed: int32 scalar controlling the dropout mask (vary it per step).
    """
    n = x.shape[0]
    out_dim = w2.shape[0]

    # Glue (all inside one jitted program; no standalone per-call dispatches).
    seed_smem = jnp.asarray(seed, dtype=jnp.int32).reshape((1,))
    b1_row = b1.reshape(1, -1)  # lane-aligned broadcast row; free bitcast-reshape
    b2_row = b2.reshape(1, -1)

    return pl.pallas_call(
        mlp_dropout_kernel,
        out_shape=jax.ShapeDtypeStruct((n, out_dim), jnp.float32),
        in_specs=[
            pl.BlockSpec(memory_space=pltpu.MemorySpace.SMEM),  # seed (1,)
            pl.BlockSpec(memory_space=pltpu.MemorySpace.VMEM),  # x
            pl.BlockSpec(memory_space=pltpu.MemorySpace.VMEM),  # w1 (torch layout)
            pl.BlockSpec(memory_space=pltpu.MemorySpace.VMEM),  # b1 (1, hidden)
            pl.BlockSpec(memory_space=pltpu.MemorySpace.VMEM),  # w2 (torch layout)
            pl.BlockSpec(memory_space=pltpu.MemorySpace.VMEM),  # b2 (1, out)
        ],
        out_specs=pl.BlockSpec(memory_space=pltpu.MemorySpace.VMEM),
    )(seed_smem, x, w1, b1_row, w2, b2_row)
    # TODO(synk): if this layer is ever scaled up (large N / hidden), add a row
    # grid with dimension_semantics=("parallel",) and fold pl.program_id(0) into
    # the dropout counter; unnecessary at 20x20.


if __name__ == "__main__":
    # Hyper-params implied by `x = torch.randn(20, 20)`:
    #   input_dim = 20, batch N = 20; pick hidden_dim = 32, output_dim = 20.
    N, INPUT_DIM, HIDDEN_DIM, OUTPUT_DIM = 20, 20, 32, 20

    key = jax.random.PRNGKey(0)
    kx, kw1, kb1, kw2, kb2 = jax.random.split(key, 5)

    x = jax.random.normal(kx, (N, INPUT_DIM), dtype=jnp.float32)

    # Deterministic parameter init (uniform, torch-style fan_in bounds).
    bound1 = 1.0 / (INPUT_DIM ** 0.5)
    bound2 = 1.0 / (HIDDEN_DIM ** 0.5)
    w1 = jax.random.uniform(kw1, (HIDDEN_DIM, INPUT_DIM), jnp.float32, -bound1, bound1)
    b1 = jax.random.uniform(kb1, (HIDDEN_DIM,), jnp.float32, -bound1, bound1)
    w2 = jax.random.uniform(kw2, (OUTPUT_DIM, HIDDEN_DIM), jnp.float32, -bound2, bound2)
    b2 = jax.random.uniform(kb2, (OUTPUT_DIM,), jnp.float32, -bound2, bound2)

    out = linear_mlp_forward(x, w1, b1, w2, b2, jnp.int32(1234))
    jax.block_until_ready(out)

    assert out.shape == (N, OUTPUT_DIM)
    assert out.dtype == jnp.float32
    # Sanity: dropout should zero roughly p=10% of entries (loose bound).
    frac_zero = float(jnp.mean((out == 0.0).astype(jnp.float32)))
    assert 0.0 <= frac_zero <= 0.5, frac_zero
    print("KERNEL_OK")
</pallas_src>

<mosaic_0001>
module attributes {stable_mosaic.version = 11 : i64} {
  func.func @mlp_dropout_kernel(%arg0: memref<1xi32, #tpu.memory_space<smem>>, %arg1: memref<20x20xf32, #tpu.memory_space<vmem>>, %arg2: memref<32x20xf32, #tpu.memory_space<vmem>>, %arg3: memref<1x32xf32, #tpu.memory_space<vmem>>, %arg4: memref<20x32xf32, #tpu.memory_space<vmem>>, %arg5: memref<1x20xf32, #tpu.memory_space<vmem>>, %arg6: memref<20x20xf32, #tpu.memory_space<vmem>>) attributes {dimension_semantics = [], scalar_prefetch = 0 : i64, scratch_operands = 0 : i64, tpu.core_type = #tpu.core_type<tc>} {
    %c0 = arith.constant 0 : index
    %c0_0 = arith.constant 0 : index
    %0 = vector.load %arg1[%c0, %c0_0] : memref<20x20xf32, #tpu.memory_space<vmem>>, vector<20x20xf32>
    %c0_1 = arith.constant 0 : index
    %c0_2 = arith.constant 0 : index
    %1 = vector.load %arg2[%c0_1, %c0_2] : memref<32x20xf32, #tpu.memory_space<vmem>>, vector<32x20xf32>
    %cst = arith.constant dense<0.000000e+00> : vector<20x32xf32>
    %2 = tpu.matmul %0, %1, %cst {dimension_numbers = #tpu.dot_dimension_numbers<[1], [1], [0], [0], [0, 0, 1, 0], [], []>} : vector<20x20xf32>, vector<32x20xf32>, vector<20x32xf32> -> vector<20x32xf32>
    %c0_3 = arith.constant 0 : index
    %c0_4 = arith.constant 0 : index
    %3 = vector.load %arg3[%c0_3, %c0_4] : memref<1x32xf32, #tpu.memory_space<vmem>>, vector<1x32xf32>
    %4 = vector.broadcast %3 : vector<1x32xf32> to vector<20x32xf32>
    %5 = arith.addf %2, %4 : vector<20x32xf32>
    %cst_5 = arith.constant 0.000000e+00 : f32
    %6 = vector.broadcast %cst_5 : f32 to vector<20x32xf32>
    %7 = arith.maximumf %5, %6 : vector<20x32xf32>
    %c0_6 = arith.constant 0 : index
    %c0_7 = arith.constant 0 : index
    %8 = vector.load %arg4[%c0_6, %c0_7] : memref<20x32xf32, #tpu.memory_space<vmem>>, vector<20x32xf32>
    %cst_8 = arith.constant dense<0.000000e+00> : vector<20x20xf32>
    %9 = tpu.matmul %7, %8, %cst_8 {dimension_numbers = #tpu.dot_dimension_numbers<[1], [1], [0], [0], [0, 0, 1, 0], [], []>} : vector<20x32xf32>, vector<20x32xf32>, vector<20x20xf32> -> vector<20x20xf32>
    %c0_9 = arith.constant 0 : index
    %c0_10 = arith.constant 0 : index
    %10 = vector.load %arg5[%c0_9, %c0_10] : memref<1x20xf32, #tpu.memory_space<vmem>>, vector<1x20xf32>
    %11 = vector.broadcast %10 : vector<1x20xf32> to vector<20x20xf32>
    %12 = arith.addf %9, %11 : vector<20x20xf32>
    %13 = tpu.iota {dimensions = array<i32: 0>} : vector<20x20xi32>
    %14 = tpu.iota {dimensions = array<i32: 1>} : vector<20x20xi32>
    %c20_i32 = arith.constant 20 : i32
    %15 = vector.broadcast %c20_i32 : i32 to vector<20x20xi32>
    %16 = arith.muli %13, %15 : vector<20x20xi32>
    %17 = arith.addi %16, %14 : vector<20x20xi32>
    %c0_11 = arith.constant 0 : index
    %18 = memref.load %arg0[%c0_11] : memref<1xi32, #tpu.memory_space<smem>>
    %c-1640531527_i32 = arith.constant -1640531527 : i32
    %19 = arith.muli %18, %c-1640531527_i32 : i32
    %20 = vector.broadcast %19 : i32 to vector<20x20xi32>
    %21 = arith.xori %17, %20 : vector<20x20xi32>
    %c16_i32 = arith.constant 16 : i32
    %22 = vector.broadcast %c16_i32 : i32 to vector<20x20xi32>
    %23 = arith.shrui %21, %22 : vector<20x20xi32>
    %24 = arith.xori %21, %23 : vector<20x20xi32>
    %c2146121005_i32 = arith.constant 2146121005 : i32
    %25 = vector.broadcast %c2146121005_i32 : i32 to vector<20x20xi32>
    %26 = arith.muli %24, %25 : vector<20x20xi32>
    %c15_i32 = arith.constant 15 : i32
    %27 = vector.broadcast %c15_i32 : i32 to vector<20x20xi32>
    %28 = arith.shrui %26, %27 : vector<20x20xi32>
    %29 = arith.xori %26, %28 : vector<20x20xi32>
    %c-2073254261_i32 = arith.constant -2073254261 : i32
    %30 = vector.broadcast %c-2073254261_i32 : i32 to vector<20x20xi32>
    %31 = arith.muli %29, %30 : vector<20x20xi32>
    %c16_i32_12 = arith.constant 16 : i32
    %32 = vector.broadcast %c16_i32_12 : i32 to vector<20x20xi32>
    %33 = arith.shrui %31, %32 : vector<20x20xi32>
    %34 = arith.xori %31, %33 : vector<20x20xi32>
    %c429496729_i32 = arith.constant 429496729 : i32
    %35 = vector.broadcast %c429496729_i32 : i32 to vector<20x20xi32>
    %36 = arith.cmpi uge, %34, %35 : vector<20x20xi32>
    %cst_13 = arith.constant 1.11111116 : f32
    %37 = vector.broadcast %cst_13 : f32 to vector<20x20xf32>
    %38 = arith.mulf %12, %37 : vector<20x20xf32>
    %cst_14 = arith.constant 0.000000e+00 : f32
    %39 = vector.broadcast %cst_14 : f32 to vector<20x20xf32>
    %40 = arith.select %36, %38, %39 : vector<20x20xi1>, vector<20x20xf32>
    %c0_15 = arith.constant 0 : index
    %c0_16 = arith.constant 0 : index
    %41 = vector.load %arg6[%c0_15, %c0_16] : memref<20x20xf32, #tpu.memory_space<vmem>>, vector<20x20xf32>
    tpu.vector_store %arg6[%c0_15, %c0_16], %40 {strides = array<i32>} : memref<20x20xf32, #tpu.memory_space<vmem>>, vector<20x20xf32>,
    return
  }
}

</mosaic_0001>

<llo_original>
// kernel: linear_mlp_forward.1
$region0: #{linear_mlp_forward.1}
  #allocation0 [shape = 'u32[]', space=smem, size = 0x4, offset = 0x4, fixed_abs, tag = 'smem constant byte address 0x4 - core index']
  #allocation1 [shape = 'u32[72,128]{1,0:T(1,128)}', space=vmem, size = 0x9000, scoped, tag = 'internal scratch']
  #allocation2 [shape = 's32[1]{0:T(128)S(6)}', space=smem, size = 0x200, scoped, tag = 'scoped memory for linear_mlp_forward.1']
  %s0 = inlined_call_operand.<no memory space> [shape: s32[1], index: 0, kind: input, shape index: {}]
  %s1 = inlined_call_operand.vmem [shape: f32[20,20], index: 1, kind: input, shape index: {}]
  %s2 = inlined_call_operand.vmem [shape: f32[32,20], index: 2, kind: input, shape index: {}]
  %s3 = inlined_call_operand.vmem [shape: f32[1,32], index: 3, kind: input, shape index: {}]
  %s4 = inlined_call_operand.vmem [shape: f32[20,32], index: 4, kind: input, shape index: {}]
  %s5 = inlined_call_operand.vmem [shape: f32[1,20], index: 5, kind: input, shape index: {}]
  %s6 = inlined_call_operand.hbm [shape: f32[20,20], index: 6, kind: output, shape index: {}]
  %s7 = sld [smem:[#allocation0]]
  $region34: #{linear_mlp_forward.1} parent=0
    _
  %s9 = ssub.s32 1, %s7
  %s10 = scalar_select 0, %s9, %s7
  %11 = sst [smem:[#allocation2]] %s0
  $region1: #{linear_mlp_forward.1} parent=0
    #allocation3 [shape = 'u8[12288]{0}', space=vmem, size = 0x3000, scoped, tag = 'output window, operand 0, single buffered']
    #allocation4 [shape = 's32[1]{0}', space=sflag, size = 0x4, scoped, tag = 'scoped memory for linear_mlp_forward.1']
    %12 = vsyncpa [#allocation4], 0
    // Predicated region
    $region2: #{linear_mlp_forward.1} parent=1 // pred_check
      _
    $region3: #{linear_mlp_forward.1} parent=1 // pred_check_branch
      %14 = sbr.rel (0) target = $region5
    $region4: #{linear_mlp_forward.1} parent=1 // pred_region
      _
    $region5: #{linear_mlp_forward.1} parent=1 // pred_fallthru
      _
    // Predicated region
    $region6: #{linear_mlp_forward.1} parent=1 // pred_check
      _
    $region7: #{linear_mlp_forward.1} parent=1 // pred_check_branch
      %16 = sbr.rel (0) target = $region9
    $region8: #{linear_mlp_forward.1} parent=1 // pred_region
      _
    $region9: #{linear_mlp_forward.1} parent=1 // pred_fallthru
      _
    // Predicated region
    $region10: #{linear_mlp_forward.1} parent=1 // pred_check
      _
    $region11: #{linear_mlp_forward.1} parent=1 // pred_check_branch
      %18 = sbr.rel (0) target = $region13
    $region12: #{linear_mlp_forward.1} parent=1 // pred_region
      _
    $region13: #{linear_mlp_forward.1} parent=1 // pred_fallthru
      _
    // Predicated region
    $region14: #{linear_mlp_forward.1} parent=1 // pred_check
      _
    $region15: #{linear_mlp_forward.1} parent=1 // pred_check_branch
      %20 = sbr.rel (0) target = $region17
    $region16: #{linear_mlp_forward.1} parent=1 // pred_region
      _
    $region17: #{linear_mlp_forward.1} parent=1 // pred_fallthru
      _
    // Predicated region
    $region18: #{linear_mlp_forward.1} parent=1 // pred_check
      _
    $region19: #{linear_mlp_forward.1} parent=1 // pred_check_branch
      %22 = sbr.rel (0) target = $region21
    $region20: #{linear_mlp_forward.1} parent=1 // pred_region
      _
    $region21: #{linear_mlp_forward.1} parent=1 // pred_fallthru
      _
    // Predicated region
    $region22: #{linear_mlp_forward.1} parent=1 // pred_check
      _
    $region23: #{linear_mlp_forward.1} parent=1 // pred_check_branch
      %24 = sbr.rel (0) target = $region25
    $region24: #{linear_mlp_forward.1} parent=1 // pred_region
      _
    $region25: #{linear_mlp_forward.1} parent=1 // pred_fallthru
      _
    %v25 = vld [vmem:[%s1] sm:$0xff]
    %v26 = vld [vmem:[%s1 + $0x8] sm:$0xff]
    %v27 = vld [vmem:[%s1 + $0x10] sm:$0xf]
    %v28 = vld [vmem:[%s2] sm:$0xff]
    %v29 = vld [vmem:[%s2 + $0x8] sm:$0xff]
    %v30 = vld [vmem:[%s2 + $0x10] sm:$0xff]
    %v31 = vld [vmem:[%s2 + $0x18] sm:$0xff]
    %v32 = vld [vmem:[%s3] sm:$0x1]
    %v34 = vperm.slane %v32, 0
    %vm36 = vcmask 162816
    %v38 = vsel %vm36, %v25, 0
    %v41 = vsel %vm36, %v26, 0
    %v44 = vsel %vm36, %v27, 0
    %v47 = vsel %vm36, %v28, 0
    %v50 = vsel %vm36, %v29, 0
    %v53 = vsel %vm36, %v30, 0
    %v56 = vsel %vm36, %v31, 0
    %58 = vmatpush.xpose.msra.mxu0 0.0
    %59 = vmatpush.xpose.msra.mxu0 0.0
    %60 = vmatpush.xpose.msra.mxu0 0.0
    %61 = vmatpush.xpose.msra.mxu0 0.0
    %62 = vmatpush.xpose.msra.mxu0 0.0
    %63 = vmatpush.xpose.msra.mxu0 0.0
    %64 = vmatpush.xpose.msra.mxu0 0.0
    %65 = vmatpush.xpose.msra.mxu0 0.0
    %66 = vmatpush.xpose.msra.mxu0 0.0
    %67 = vmatpush.xpose.msra.mxu0 0.0
    %68 = vmatpush.xpose.msra.mxu0 0.0
    %69 = vmatpush.xpose.msra.mxu0 0.0
    %70 = vmatpush.xpose.msra.mxu0 %v56
    %71 = vmatpush.xpose.msra.mxu0 %v53
    %72 = vmatpush.xpose.msra.mxu0 %v50
    %73 = vmatpush.xpose.msra.mxu0 %v47
    %74 = vmatmul.f32.gmra.mxu0 %v38
    %v75 = vpop.f32.mrf.mxu0
    %v76 = vadd.f32 %v34, %v75
    %77 = vmatmul.f32.gmra.mxu0 %v41
    %v78 = vpop.f32.mrf.mxu0
    %v79 = vadd.f32 %v34, %v78
    %80 = vmatmul.f32.gmra.mxu0 %v44
    %v81 = vpop.f32.mrf.mxu0
    %v82 = vadd.f32 %v34, %v81
    %83 = vdwg.mxu0
    %v84 = vmax.f32 %v76, 0.0
    %v85 = vmax.f32 %v79, 0.0
    %v86 = vmax.f32 %v82, 0.0
    %v87 = vld [vmem:[%s4] sm:$0xff]
    %v88 = vld [vmem:[%s4 + $0x8] sm:$0xff]
    %v89 = vld [vmem:[%s4 + $0x10] sm:$0xf]
    %v90 = vld [vmem:[%s5] sm:$0x1]
    %v92 = vperm.slane %v90, 0
    %vm94 = vcmask 261120
    %v96 = vsel %vm94, %v84, 0
    %v99 = vsel %vm94, %v85, 0
    %v102 = vsel %vm94, %v86, 0
    %v105 = vsel %vm94, %v87, 0
    %v108 = vsel %vm94, %v88, 0
    %v111 = vsel %vm94, %v89, 0
    %113 = vmatpush.xpose.msra.mxu0 0.0
    %114 = vmatpush.xpose.msra.mxu0 0.0
    %115 = vmatpush.xpose.msra.mxu0 0.0
    %116 = vmatpush.xpose.msra.mxu0 0.0
    %117 = vmatpush.xpose.msra.mxu0 0.0
    %118 = vmatpush.xpose.msra.mxu0 0.0
    %119 = vmatpush.xpose.msra.mxu0 0.0
    %120 = vmatpush.xpose.msra.mxu0 0.0
    %121 = vmatpush.xpose.msra.mxu0 0.0
    %122 = vmatpush.xpose.msra.mxu0 0.0
    %123 = vmatpush.xpose.msra.mxu0 0.0
    %124 = vmatpush.xpose.msra.mxu0 0.0
    %125 = vmatpush.xpose.msra.mxu0 0.0
    %126 = vmatpush.xpose.msra.mxu0 %v111
    %127 = vmatpush.xpose.msra.mxu0 %v108
    %128 = vmatpush.xpose.msra.mxu0 %v105
    %129 = vmatmul.f32.gmra.mxu0 %v96
    %v130 = vpop.f32.mrf.mxu0
    %v131 = vadd.f32 %v92, %v130
    %132 = vmatmul.f32.gmra.mxu0 %v99
    %v133 = vpop.f32.mrf.mxu0
    %v134 = vadd.f32 %v92, %v133
    %135 = vmatmul.f32.gmra.mxu0 %v102
    %v136 = vpop.f32.mrf.mxu0
    %v137 = vadd.f32 %v92, %v136
    %138 = vdwg.mxu0
    %v139 = vlaneseq
    %v140 = vshrl.u32 %v139, 7
    %v141 = vadd.s32 %v140, 8
    %v142 = vadd.s32 %v140, 16
    %v143 = vlaneseq
    %v144 = vand.u32 %v143, 127
    %v145 = vmul.u32 %v140, 20
    %v146 = vmul.u32 %v141, 20
    %v147 = vmul.u32 %v142, 20
    %v148 = vadd.s32 %v145, %v144
    %v149 = vadd.s32 %v146, %v144
    %v150 = vadd.s32 %v147, %v144
    %s151 = sld [smem:[#allocation2]]
    %s152 = smul.u32 %s151, 2654435769
    %v153 = vstv %s152
    %v154 = vxor.u32 %v148, %v153
    %v155 = vxor.u32 %v149, %v153
    %v156 = vxor.u32 %v150, %v153
    %v157 = vshrl.u32 %v154, 16
    %v158 = vshrl.u32 %v155, 16
    %v159 = vshrl.u32 %v156, 16
    %v160 = vxor.u32 %v154, %v157
    %v161 = vxor.u32 %v155, %v158
    %v162 = vxor.u32 %v156, %v159
    %v163 = vmul.u32 %v160, 2146121005
    %v164 = vmul.u32 %v161, 2146121005
    %v165 = vmul.u32 %v162, 2146121005
    %v166 = vshrl.u32 %v163, 15
    %v167 = vshrl.u32 %v164, 15
    %v168 = vshrl.u32 %v165, 15
    %v169 = vxor.u32 %v163, %v166
    %v170 = vxor.u32 %v164, %v167
    %v171 = vxor.u32 %v165, %v168
    %v172 = vmul.u32 %v169, 2221713035
    %v173 = vmul.u32 %v170, 2221713035
    %v174 = vmul.u32 %v171, 2221713035
    %v175 = vshrl.u32 %v172, 16
    %v176 = vshrl.u32 %v173, 16
    %v177 = vshrl.u32 %v174, 16
    %v178 = vxor.u32 %v172, %v175
    %v179 = vxor.u32 %v173, %v176
    %v180 = vxor.u32 %v174, %v177
    %v181 = vadd.s32 %v178, 2147483648
    %vm183 = vcmp.ge.s32.totalorder %v181, 2576980377
    %v184 = vadd.s32 %v179, 2147483648
    %vm186 = vcmp.ge.s32.totalorder %v184, 2576980377
    %v187 = vadd.s32 %v180, 2147483648
    %vm189 = vcmp.ge.s32.totalorder %v187, 2576980377
    %v190 = vmul.f32 %v131, 1.1111112
    %v191 = vmul.f32 %v134, 1.1111112
    %v192 = vmul.f32 %v137, 1.1111112
    %v193 = vsel %vm183, %v190, 0.0
    %v194 = vsel %vm186, %v191, 0.0
    %v195 = vsel %vm189, %v192, 0.0
    %196 = vst.msk [vmem:[#allocation3] sm:$0xff] %vm36, %v193
    %197 = vst.msk [vmem:[#allocation3 + $0x8] sm:$0xff] %vm36, %v194
    %vm198 = vcmask 158720
    %199 = vst.msk [vmem:[#allocation3 + $0x10] sm:$0xf] %vm198, %v195
    // Predicated region
    $region26: #{linear_mlp_forward.1} parent=1 // pred_check
      _
    $region27: #{linear_mlp_forward.1} parent=1 // pred_check_branch
      %201 = sbr.rel (0) target = $region29
    $region28: #{linear_mlp_forward.1} parent=1 // pred_region
      %203 = vsyncadd [#allocation4], 0
      %s204 = sshll.u32 [#allocation3], 4
      %s205 = int_to_ptr.vmem [resolvable:$true] %s204
      %s206 = sshll.u32 %s6, 4
      %s207 = int_to_ptr.hbm [resolvable:$true] %s206
      %212 = dma.vmem_to_hbm [thread:$0]  %s205, 384, %s207, [#allocation4], 128, 128, 8
    $region29: #{linear_mlp_forward.1} parent=1 // pred_fallthru
      _
    // Predicated region
    $region30: #{linear_mlp_forward.1} parent=1 // pred_check
      _
    $region31: #{linear_mlp_forward.1} parent=1 // pred_check_branch
      %214 = sbr.rel (0) target = $region33
    $region32: #{linear_mlp_forward.1} parent=1 // pred_region
      %216 = dma.done [#allocation4], 384
    $region33: #{linear_mlp_forward.1} parent=1 // pred_fallthru
      _
    %217 = vsyncpa [#allocation4], 1

</llo_original>
